<compile_context>
chip_gen: v6e
topology: v6e:2x2x1
jax: 0.10.0
libtpu: 0.0.40
codegen_flags: <defaults>
</compile_context>

<pallas_src>
import functools

import jax
import jax.numpy as jnp
from jax.experimental import pallas as pl
from jax.experimental.pallas import tpu as pltpu

VIS_EEG = 310
VIS_EYE = 31
VIS_TOTAL = VIS_EEG + VIS_EYE      # 341
HIDDEN = 100
D_OUT = 384                        # 341 lane-padded up to a multiple of 128


def _round_up(n, m):
    return (n + m - 1) // m * m


def bdae_kernel(x_ref, w_ref, b_ref, out_ref, *, compute_dtype):
    """One MXU pass: (bm, 341) @ (341, 384), f32 accumulation, lane-dense store."""
    x = x_ref[...].astype(compute_dtype)
    acc = jnp.dot(x, w_ref[...], preferred_element_type=jnp.float32)
    out_ref[...] = (acc + b_ref[...]).astype(out_ref.dtype)


def init_params(key):
    """PyTorch nn.Linear-style init: U(-1/sqrt(fan_in), 1/sqrt(fan_in)).

    Weights are stored transposed relative to torch, i.e. shape (in, out)."""
    dims = [
        (VIS_EEG, HIDDEN),        # fc1
        (VIS_EYE, HIDDEN),        # fc2
        (2 * HIDDEN, HIDDEN),     # fc3
        (HIDDEN, 2 * HIDDEN),     # fc4
        (HIDDEN, VIS_EEG),        # fc5
        (HIDDEN, VIS_EYE),        # fc6
    ]
    params = []
    keys = jax.random.split(key, 2 * len(dims))
    for i, (fan_in, fan_out) in enumerate(dims):
        bound = 1.0 / float(fan_in) ** 0.5
        w = jax.random.uniform(keys[2 * i], (fan_in, fan_out), jnp.float32, -bound, bound)
        b = jax.random.uniform(keys[2 * i + 1], (1, fan_out), jnp.float32, -bound, bound)
        params.append((w, b))
    return params


def _pack_params(params, *, use_bf16):
    """Collapse the affine chain fc1..fc6 into one (341, 384) weight + (1, 384) bias."""
    (w1, b1), (w2, b2), (w3, b3), (w4, b4), (w5, b5), (w6, b6) = params
    f32 = jnp.float32
    hi = jax.lax.Precision.HIGHEST

    w3 = w3.astype(f32)
    w4 = w4.astype(f32)
    b3 = b3.reshape(1, -1).astype(f32)
    b4 = b4.reshape(1, -1).astype(f32)

    # Block-diagonal packing of the split encoder / decoder layers.  Exact:
    # the zero blocks contribute nothing.
    w12 = jnp.zeros((VIS_TOTAL, 2 * HIDDEN), f32)
    w12 = w12.at[:VIS_EEG, :HIDDEN].set(w1.astype(f32))
    w12 = w12.at[VIS_EEG:, HIDDEN:].set(w2.astype(f32))
    w56 = jnp.zeros((2 * HIDDEN, VIS_TOTAL), f32)
    w56 = w56.at[:HIDDEN, :VIS_EEG].set(w5.astype(f32))
    w56 = w56.at[HIDDEN:, VIS_EEG:].set(w6.astype(f32))
    b12 = jnp.concatenate([b1.reshape(1, -1), b2.reshape(1, -1)], axis=1).astype(f32)
    b56 = jnp.concatenate([b5.reshape(1, -1), b6.reshape(1, -1)], axis=1).astype(f32)

    # No nonlinearities anywhere in the PyTorch forward -> exact collapse.
    w_tot = jnp.dot(jnp.dot(jnp.dot(w12, w3, precision=hi), w4, precision=hi),
                    w56, precision=hi)                                   # (341, 341)
    b_tot = jnp.dot(jnp.dot(jnp.dot(b12, w3, precision=hi) + b3, w4, precision=hi)
                    + b4, w56, precision=hi) + b56                       # (1, 341)

    # Lane-pad only the output (lane) dimension to 384 so kernel stores stay dense.
    w_pad = jnp.zeros((VIS_TOTAL, D_OUT), f32).at[:, :VIS_TOTAL].set(w_tot)
    b_pad = jnp.zeros((1, D_OUT), f32).at[:, :VIS_TOTAL].set(b_tot)
    if use_bf16:
        w_pad = w_pad.astype(jnp.bfloat16)
    return w_pad, b_pad


@functools.partial(jax.jit, static_argnames=("bm", "use_bf16"))
def _bdae_padded_out(x, params, *, bm, use_bf16):
    """Run the fused kernel; returns the lane-padded (rows, 384) output slab.

    Valid data is out[:B, :341] = [eeg_recon | eye_recon]."""
    B = x.shape[0]
    bm = _round_up(max(bm, 8), 8)

    B8 = _round_up(max(B, 1), 8)
    bm_eff = min(bm, B8)
    # Force >= 2 grid tiles whenever possible so both v7x TensorCores get work
    # on the "parallel" batch axis (on single-TC v5e/v6e this only adds one
    # cheap ~0.35us grid step).
    if B8 >= 16:
        bm_eff = min(bm_eff, _round_up(pl.cdiv(B8, 2), 8))
    grid_n = pl.cdiv(B, bm_eff)
    rows = grid_n * bm_eff

    x32 = x.astype(jnp.float32)
    # Only a *conditional* row pad for non-divisible batches.  No lane padding:
    # the 341-wide input block (== full array last dim) is legal and Mosaic
    # handles the K=341 contraction internally.
    x_in = jnp.pad(x32, ((0, rows - B), (0, 0))) if rows != B else x32

    w_pad, b_pad = _pack_params(params, use_bf16=use_bf16)
    compute_dtype = jnp.bfloat16 if use_bf16 else jnp.float32
    w_itemsize = 2 if use_bf16 else 4

    cost = pl.CostEstimate(
        flops=2 * rows * VIS_TOTAL * D_OUT,
        transcendentals=0,
        bytes_accessed=(rows * VIS_TOTAL * 4            # x (streamed)
                        + VIS_TOTAL * D_OUT * w_itemsize  # fused W (resident)
                        + D_OUT * 4                       # fused bias
                        + rows * D_OUT * 4),              # output
    )

    out = pl.pallas_call(
        functools.partial(bdae_kernel, compute_dtype=compute_dtype),
        out_shape=jax.ShapeDtypeStruct((rows, D_OUT), jnp.float32),
        grid=(grid_n,),
        in_specs=[
            pl.BlockSpec((bm_eff, VIS_TOTAL), lambda i: (i, 0)),   # x batch tile
            pl.BlockSpec((VIS_TOTAL, D_OUT), lambda i: (0, 0)),    # fused W (resident)
            pl.BlockSpec((1, D_OUT), lambda i: (0, 0)),            # fused bias
        ],
        out_specs=pl.BlockSpec((bm_eff, D_OUT), lambda i: (i, 0)),
        compiler_params=pltpu.CompilerParams(
            dimension_semantics=("parallel",),
        ),
        cost_estimate=cost,
    )(x_in, w_pad, b_pad)
    return out


def bdae_forward_fused(x, params, *, bm=512, use_bf16=False):
    """Fused reconstruction slab [B, 341] = [eeg_recon | eye_recon] (one slice)."""
    out = _bdae_padded_out(x, params, bm=bm, use_bf16=use_bf16)
    return out[: x.shape[0], :VIS_TOTAL]


def bdae_forward(x, params, *, bm=512, use_bf16=False):
    """Module-semantics forward: (eeg_recon [B, 310], eye_recon [B, 31])."""
    out = _bdae_padded_out(x, params, bm=bm, use_bf16=use_bf16)
    B = x.shape[0]
    return out[:B, :VIS_EEG], out[:B, VIS_EEG:VIS_TOTAL]


def bdae_forward_ref(x, params):
    """Pure-JAX reference matching the PyTorch forward layer-by-layer."""
    (w1, b1), (w2, b2), (w3, b3), (w4, b4), (w5, b5), (w6, b6) = params
    hi = jax.lax.Precision.HIGHEST
    eeg_hidden = jnp.dot(x[:, :VIS_EEG], w1, precision=hi) + b1
    eye_hidden = jnp.dot(x[:, VIS_EEG:], w2, precision=hi) + b2
    shared = jnp.dot(jnp.concatenate([eeg_hidden, eye_hidden], axis=1), w3, precision=hi) + b3
    recon = jnp.dot(shared, w4, precision=hi) + b4
    eeg_recon = jnp.dot(recon[:, :HIDDEN], w5, precision=hi) + b5
    eye_recon = jnp.dot(recon[:, HIDDEN:], w6, precision=hi) + b6
    return eeg_recon, eye_recon


if __name__ == "__main__":
    key = jax.random.PRNGKey(0)
    k_x, k_p = jax.random.split(key)
    params = init_params(k_p)

    # Case 1: the module's default batch size (32) -> 2-tile parallel grid.
    B1 = 32
    x1 = jax.random.normal(k_x, (B1, VIS_TOTAL), jnp.float32)
    eeg1, eye1 = bdae_forward(x1, params)
    jax.block_until_ready((eeg1, eye1))
    eeg1_ref, eye1_ref = bdae_forward_ref(x1, params)
    assert eeg1.shape == (B1, VIS_EEG) and eye1.shape == (B1, VIS_EYE)
    assert jnp.allclose(eeg1, eeg1_ref, atol=5e-3, rtol=5e-3)
    assert jnp.allclose(eye1, eye1_ref, atol=5e-3, rtol=5e-3)

    # Case 2: non-aligned batch -> exercises the conditional row pad path.
    B2 = 45
    x2 = jax.random.normal(jax.random.PRNGKey(1), (B2, VIS_TOTAL), jnp.float32)
    eeg2, eye2 = bdae_forward(x2, params)
    jax.block_until_ready((eeg2, eye2))
    eeg2_ref, eye2_ref = bdae_forward_ref(x2, params)
    assert eeg2.shape == (B2, VIS_EEG) and eye2.shape == (B2, VIS_EYE)
    assert jnp.allclose(eeg2, eeg2_ref, atol=5e-3, rtol=5e-3)
    assert jnp.allclose(eye2, eye2_ref, atol=5e-3, rtol=5e-3)

    # Case 3: opt-in bf16 MXU path (native MXU dtype, f32 accumulation).
    B3 = 64
    x3 = jax.random.normal(jax.random.PRNGKey(2), (B3, VIS_TOTAL), jnp.float32)
    eeg3, eye3 = bdae_forward(x3, params, use_bf16=True)
    jax.block_until_ready((eeg3, eye3))
    eeg3_ref, eye3_ref = bdae_forward_ref(x3, params)
    assert eeg3.shape == (B3, VIS_EEG) and eye3.shape == (B3, VIS_EYE)
    assert jnp.allclose(eeg3, eeg3_ref, atol=5e-2, rtol=5e-2)
    assert jnp.allclose(eye3, eye3_ref, atol=5e-2, rtol=5e-2)

    print("KERNEL_OK")
</pallas_src>

<mosaic_0001>
module attributes {stable_mosaic.version = 11 : i64} {
  func.func @bdae_kernel(%arg0: i32, %arg1: memref<16x341xf32, #tpu.memory_space<vmem>>, %arg2: memref<341x384xf32, #tpu.memory_space<vmem>>, %arg3: memref<1x384xf32, #tpu.memory_space<vmem>>, %arg4: memref<16x384xf32, #tpu.memory_space<vmem>>) attributes {dimension_semantics = [#tpu.dimension_semantics<parallel>], iteration_bounds = array<i64: 2>, scalar_prefetch = 0 : i64, scratch_operands = 0 : i64, tpu.core_type = #tpu.core_type<tc>, window_params = [{transform_indices = @transform_0, window_bounds = array<i64: 16, 341>}, {pipeline_mode = #tpu.pipeline_mode<synchronous>, transform_indices = @transform_1, window_bounds = array<i64: 341, 384>}, {pipeline_mode = #tpu.pipeline_mode<synchronous>, transform_indices = @transform_2, window_bounds = array<i64: 1, 384>}, {transform_indices = @transform_3, window_bounds = array<i64: 16, 384>}]} {
    %c0 = arith.constant 0 : index
    %c0_0 = arith.constant 0 : index
    %0 = vector.load %arg1[%c0, %c0_0] : memref<16x341xf32, #tpu.memory_space<vmem>>, vector<16x341xf32>
    %c0_1 = arith.constant 0 : index
    %c0_2 = arith.constant 0 : index
    %1 = vector.load %arg2[%c0_1, %c0_2] : memref<341x384xf32, #tpu.memory_space<vmem>>, vector<341x384xf32>
    %cst = arith.constant dense<0.000000e+00> : vector<16x384xf32>
    %2 = tpu.matmul %0, %1, %cst {dimension_numbers = #tpu.dot_dimension_numbers<[1], [0], [0], [1], [0, 0, 1, 1], [], []>} : vector<16x341xf32>, vector<341x384xf32>, vector<16x384xf32> -> vector<16x384xf32>
    %c0_3 = arith.constant 0 : index
    %c0_4 = arith.constant 0 : index
    %3 = vector.load %arg3[%c0_3, %c0_4] : memref<1x384xf32, #tpu.memory_space<vmem>>, vector<1x384xf32>
    %4 = vector.broadcast %3 : vector<1x384xf32> to vector<16x384xf32>
    %5 = arith.addf %2, %4 : vector<16x384xf32>
    %c0_5 = arith.constant 0 : index
    %c0_6 = arith.constant 0 : index
    %6 = vector.load %arg4[%c0_5, %c0_6] : memref<16x384xf32, #tpu.memory_space<vmem>>, vector<16x384xf32>
    tpu.vector_store %arg4[%c0_5, %c0_6], %5 {strides = array<i32>} : memref<16x384xf32, #tpu.memory_space<vmem>>, vector<16x384xf32>,
    return
  }
  func.func @transform_0(%arg0: i32) -> (i32, i32) {
    %c0_i32 = arith.constant 0 : i32
    %c0_i32_0 = arith.constant 0 : i32
    return %arg0, %c0_i32 : i32, i32
  }
  func.func @transform_1(%arg0: i32) -> (i32, i32) {
    %c0_i32 = arith.constant 0 : i32
    %c0_i32_0 = arith.constant 0 : i32
    %c0_i32_1 = arith.constant 0 : i32
    return %c0_i32, %c0_i32_0 : i32, i32
  }
  func.func @transform_2(%arg0: i32) -> (i32, i32) {
    %c0_i32 = arith.constant 0 : i32
    %c0_i32_0 = arith.constant 0 : i32
    %c0_i32_1 = arith.constant 0 : i32
    return %c0_i32, %c0_i32_0 : i32, i32
  }
  func.func @transform_3(%arg0: i32) -> (i32, i32) {
    %c0_i32 = arith.constant 0 : i32
    %c0_i32_0 = arith.constant 0 : i32
    return %arg0, %c0_i32 : i32, i32
  }
}

</mosaic_0001>

<llo_original>
// kernel: _bdae_padded_out.1
$region0: #{_bdae_padded_out.1}
  #allocation0 [shape = 'u32[]', space=smem, size = 0x4, offset = 0x4, fixed_abs, tag = 'smem constant byte address 0x4 - core index']
  #allocation1 [shape = 'u32[144,128]{1,0:T(1,128)}', space=vmem, size = 0x12000, scoped, tag = 'internal scratch']
  %s0 = inlined_call_operand.vmem [shape: f32[32,341], index: 0, kind: input, shape index: {}]
  %s1 = inlined_call_operand.vmem [shape: f32[341,384], index: 1, kind: input, shape index: {}]
  %s2 = inlined_call_operand.vmem [shape: f32[1,384], index: 2, kind: input, shape index: {}]
  %s3 = inlined_call_operand.hbm [shape: f32[32,384], index: 3, kind: output, shape index: {}]
  %s4 = sld [smem:[#allocation0]]
  $region45: #{_bdae_padded_out.1} parent=0
    _
  %s6 = ssub.s32 1, %s4
  %s7 = scalar_select 0, %s6, %s4
  $region1: #{_bdae_padded_out.1} parent=0
    #allocation2 [shape = 'u8[49152]{0}', space=vmem, size = 0xc000, scoped, tag = 'output window, operand 0']
    #allocation3 [shape = 's32[2]{0}', space=sflag, size = 0x8, scoped, tag = 'scoped memory for _bdae_padded_out.1']
    %8 = vsyncpa [#allocation3], 0
    %s9 = scalar_lea.sflag [#allocation3], 1
    %10 = vsyncpa %s9, 0
    loop: start=0, step=1, limit=4
    $region2: #{_bdae_padded_out.1} parent=1 // loop_pre_header
      _
    $region3: #{_bdae_padded_out.1} parent=1 // loop_header
      %s12 = sphi 0, %s16
      %p13 = scmp.ge.s32.totalorder %s12, 4
      %s22 = sphi 0, %s24
      %s25 = sphi 0, %s22
      %s26 = sphi 0, %s25
      %s42 = sphi 0, %s26
      %s46 = sphi 0, %s46
      %s48 = sphi 0, %s46
      %s49 = sphi 0, %s48
      %s63 = sphi 0, %s49
      %s67 = sphi 0, %s67
      %s69 = sphi 0, %s67
      %s70 = sphi 0, %s69
      %s84 = sphi 0, %s70
      %s90 = sphi 0, %s92
      %s93 = sphi 0, %s90
      %s94 = sphi 0, %s93
      %s110 = sphi 0, %s94
    $region4: #{_bdae_padded_out.1} parent=1 // loop_header_branch
      %15 = sbr.rel (%p13) target = $region8
    $region5: #{_bdae_padded_out.1} parent=1 // loop_body
      %s17 = ssub.s32 %s12, 1
      %s18 = ssub.s32 %s12, 2
      %s19 = sadd.s32 %s12, 1
      %s20 = ssub.s32 %s12, %s19
      %p21 = scmp.eq.s32.totalorder %s20, 0
      %s23 = sadd.s32 %s22, 1
      %s24 = scalar_select %p21, %s22, %s23
      %p27 = pneg %p21
      %p28 = scmp.eq.s32.totalorder %s12, 1
      %p29 = por %p27, %p28
      %p30 = scmp.ne.s32.totalorder %s22, %s25
      %p31 = scmp.eq.s32.totalorder %s12, 0
      %p32 = por %p30, %p31
      %p33 = scmp.ne.s32.totalorder %s22, %s25
      %p34 = scmp.eq.s32.totalorder %s17, 1
      %p35 = por %p33, %p34
      %p36 = scmp.ne.s32.totalorder %s25, %s26
      %p37 = scmp.eq.s32.totalorder %s17, 0
      %p38 = por %p36, %p37
      %p39 = scmp.ne.s32.totalorder %s25, %s26
      %p40 = scmp.eq.s32.totalorder %s18, 1
      %p41 = por %p39, %p40
      %p43 = scmp.ne.s32.totalorder %s26, %s42
      %p44 = scmp.eq.s32.totalorder %s18, 0
      %p45 = por %p43, %p44
      %s47 = sadd.s32 %s46, 1
      %p50 = scmp.eq.s32.totalorder %s12, 1
      %p51 = scmp.ne.s32.totalorder %s46, %s48
      %p52 = scmp.eq.s32.totalorder %s12, 0
      %p53 = por %p51, %p52
      %p54 = scmp.ne.s32.totalorder %s46, %s48
      %p55 = scmp.eq.s32.totalorder %s17, 1
      %p56 = por %p54, %p55
      %p57 = scmp.ne.s32.totalorder %s48, %s49
      %p58 = scmp.eq.s32.totalorder %s17, 0
      %p59 = por %p57, %p58
      %p60 = scmp.ne.s32.totalorder %s48, %s49
      %p61 = scmp.eq.s32.totalorder %s18, 1
      %p62 = por %p60, %p61
      %p64 = scmp.ne.s32.totalorder %s49, %s63
      %p65 = scmp.eq.s32.totalorder %s18, 0
      %p66 = por %p64, %p65
      %s68 = sadd.s32 %s67, 1
      %p71 = scmp.eq.s32.totalorder %s12, 1
      %p72 = scmp.ne.s32.totalorder %s67, %s69
      %p73 = scmp.eq.s32.totalorder %s12, 0
      %p74 = por %p72, %p73
      %p75 = scmp.ne.s32.totalorder %s67, %s69
      %p76 = scmp.eq.s32.totalorder %s17, 1
      %p77 = por %p75, %p76
      %p78 = scmp.ne.s32.totalorder %s69, %s70
      %p79 = scmp.eq.s32.totalorder %s17, 0
      %p80 = por %p78, %p79
      %p81 = scmp.ne.s32.totalorder %s69, %s70
      %p82 = scmp.eq.s32.totalorder %s18, 1
      %p83 = por %p81, %p82
      %p85 = scmp.ne.s32.totalorder %s70, %s84
      %p86 = scmp.eq.s32.totalorder %s18, 0
      %p87 = por %p85, %p86
      %s88 = ssub.s32 %s12, %s19
      %p89 = scmp.eq.s32.totalorder %s88, 0
      %s91 = sadd.s32 %s90, 1
      %s92 = scalar_select %p89, %s90, %s91
      %p95 = pneg %p89
      %p96 = scmp.eq.s32.totalorder %s12, 1
      %p97 = por %p95, %p96
      %p98 = scmp.ne.s32.totalorder %s90, %s93
      %p99 = scmp.eq.s32.totalorder %s12, 0
      %p100 = por %p98, %p99
      %p101 = scmp.ne.s32.totalorder %s90, %s93
      %p102 = scmp.eq.s32.totalorder %s17, 1
      %p103 = por %p101, %p102
      %p104 = scmp.ne.s32.totalorder %s93, %s94
      %p105 = scmp.eq.s32.totalorder %s17, 0
      %p106 = por %p104, %p105
      %p107 = scmp.ne.s32.totalorder %s93, %s94
      %p108 = scmp.eq.s32.totalorder %s18, 1
      %p109 = por %p107, %p108
      %p111 = scmp.ne.s32.totalorder %s94, %s110
      %p112 = scmp.eq.s32.totalorder %s18, 0
      %p113 = por %p111, %p112
      %p114 = scmp.le.s32.totalorder 1, %s12
      %p115 = scmp.lt.s32.totalorder %s12, 3
      %p116 = pnand %p114, %p115
      %p117 = pneg %p116
      // Predicated region
      $region9: #{_bdae_padded_out.1} parent=5 // pred_check
        _
      $region10: #{_bdae_padded_out.1} parent=5 // pred_check_branch
        %119 = sbr.rel (%p116) target = $region12
      $region11: #{_bdae_padded_out.1} parent=5 // pred_region
        %s120 = ssub.s32 %s12, 1
        // Predicated region
        $region13: #{_bdae_padded_out.1} parent=11 // pred_check
          %p121 = pneg %p59
        $region14: #{_bdae_padded_out.1} parent=11 // pred_check_branch
          %123 = sbr.rel (%p121) target = $region16
        $region15: #{_bdae_padded_out.1} parent=11 // pred_region
          _
        $region16: #{_bdae_padded_out.1} parent=11 // pred_fallthru
          _
        // Predicated region
        $region17: #{_bdae_padded_out.1} parent=11 // pred_check
          %p124 = pneg %p80
        $region18: #{_bdae_padded_out.1} parent=11 // pred_check_branch
          %126 = sbr.rel (%p124) target = $region20
        $region19: #{_bdae_padded_out.1} parent=11 // pred_region
          _
        $region20: #{_bdae_padded_out.1} parent=11 // pred_fallthru
          _
      $region12: #{_bdae_padded_out.1} parent=5 // pred_fallthru
        _
      %p127 = scmp.lt.s32.totalorder %s12, 2
      // Predicated region
      $region21: #{_bdae_padded_out.1} parent=5 // pred_check
        %p128 = pneg %p127
      $region22: #{_bdae_padded_out.1} parent=5 // pred_check_branch
        %130 = sbr.rel (%p128) target = $region24
      $region23: #{_bdae_padded_out.1} parent=5 // pred_region
        // Predicated region
        $region25: #{_bdae_padded_out.1} parent=23 // pred_check
          %p131 = pneg %p32
        $region26: #{_bdae_padded_out.1} parent=23 // pred_check_branch
          %133 = sbr.rel (%p131) target = $region28
        $region27: #{_bdae_padded_out.1} parent=23 // pred_region
          %s134 = smul.u32 2, %s12
          %p135 = scmp.lt.s32.totalorder %s134, 3
          %s136 = scalar_select %p135, %s134, 3
          %s137 = smul.addr %s136, 3
          %s138 = smul.addr %s137, 8
          %s139 = scalar_lea.vmem %s0, %s138
          %s140 = smul.u32 2, %s12
        $region28: #{_bdae_padded_out.1} parent=23 // pred_fallthru
          _
      $region24: #{_bdae_padded_out.1} parent=5 // pred_fallthru
        _
      %p141 = scmp.le.s32.totalorder 1, %s12
      %p142 = scmp.lt.s32.totalorder %s12, 3
      %p143 = pnand %p141, %p142
      %p144 = pneg %p143
      // Predicated region
      $region29: #{_bdae_padded_out.1} parent=5 // pred_check
        _
      $region30: #{_bdae_padded_out.1} parent=5 // pred_check_branch
        %146 = sbr.rel (%p143) target = $region32
      $region31: #{_bdae_padded_out.1} parent=5 // pred_region
        %s147 = ssub.s32 %s12, 1
        %s148 = smul.u32 2, %s17
        %p149 = scmp.lt.s32.totalorder %s148, 3
        %s150 = scalar_select %p149, %s148, 3
        %s151 = smul.addr %s150, 3
        %s152 = smul.addr %s151, 8
        %s153 = scalar_lea.vmem %s0, %s152
        %p154 = pneg %p38
        %p155 = pneg %p35
        %p156 = pneg %p59
        %p157 = pneg %p56
        %p158 = pneg %p80
        %p159 = pneg %p77
        %p160 = pneg %p106
        %p161 = pneg %p103
        %s162 = sand.u32 %s93, 1
        %s163 = scalar_lea.sflag [#allocation3], %s162
        %s164 = sand.u32 %s93, 1
        %s165 = smul.addr %s164, 48
        %s166 = scalar_lea.vmem [#allocation2], %s165
        %s167 = smul.u32 2, %s17
        %p168 = scmp.lt.s32.totalorder %s167, 3
        %s169 = scalar_select %p168, %s167, 3
        %s170 = smul.addr %s169, 3
        %s171 = smul.addr %s170, 8
        %s172 = scalar_lea.vmem %s0, %s171
        %s173 = smul.u32 2, %s17
        %s174 = smul.u32 2, %s17
        %v175 = vld [vmem:[%s172] sm:$0xff]
        %v176 = vld [vmem:[%s172 + $0x8] sm:$0xff]
        %v177 = vld [vmem:[%s172 + $0x10] sm:$0xff]
        %v178 = vld [vmem:[%s172 + $0x18] sm:$0xff]
        %v179 = vld [vmem:[%s172 + $0x20] sm:$0xff]
        %v180 = vld [vmem:[%s172 + $0x28] sm:$0xff]
        %v181 = vld [vmem:[%s1] sm:$0xff]
        %v182 = vld [vmem:[%s1 + $0x8] sm:$0xff]
        %v183 = vld [vmem:[%s1 + $0x10] sm:$0xff]
        %v184 = vld [vmem:[%s1 + $0x18] sm:$0xff]
        %v185 = vld [vmem:[%s1 + $0x20] sm:$0xff]
        %v186 = vld [vmem:[%s1 + $0x28] sm:$0xff]
        %v187 = vld [vmem:[%s1 + $0x30] sm:$0xff]
        %v188 = vld [vmem:[%s1 + $0x38] sm:$0xff]
        %v189 = vld [vmem:[%s1 + $0x40] sm:$0xff]
        %v190 = vld [vmem:[%s1 + $0x48] sm:$0xff]
        %v191 = vld [vmem:[%s1 + $0x50] sm:$0xff]
        %v192 = vld [vmem:[%s1 + $0x58] sm:$0xff]
        %v193 = vld [vmem:[%s1 + $0x60] sm:$0xff]
        %v194 = vld [vmem:[%s1 + $0x68] sm:$0xff]
        %v195 = vld [vmem:[%s1 + $0x70] sm:$0xff]
        %v196 = vld [vmem:[%s1 + $0x78] sm:$0xff]
        %v197 = vld [vmem:[%s1 + $0x80] sm:$0xff]
        %v198 = vld [vmem:[%s1 + $0x88] sm:$0xff]
        %v199 = vld [vmem:[%s1 + $0x90] sm:$0xff]
        %v200 = vld [vmem:[%s1 + $0x98] sm:$0xff]
        %v201 = vld [vmem:[%s1 + $0xa0] sm:$0xff]
        %v202 = vld [vmem:[%s1 + $0xa8] sm:$0xff]
        %v203 = vld [vmem:[%s1 + $0xb0] sm:$0xff]
        %v204 = vld [vmem:[%s1 + $0xb8] sm:$0xff]
        %v205 = vld [vmem:[%s1 + $0xc0] sm:$0xff]
        %v206 = vld [vmem:[%s1 + $0xc8] sm:$0xff]
        %v207 = vld [vmem:[%s1 + $0xd0] sm:$0xff]
        %v208 = vld [vmem:[%s1 + $0xd8] sm:$0xff]
        %v209 = vld [vmem:[%s1 + $0xe0] sm:$0xff]
        %v210 = vld [vmem:[%s1 + $0xe8] sm:$0xff]
        %v211 = vld [vmem:[%s1 + $0xf0] sm:$0xff]
        %v212 = vld [vmem:[%s1 + $0xf8] sm:$0xff]
        %v213 = vld [vmem:[%s1 + $0x100] sm:$0xff]
        %v214 = vld [vmem:[%s1 + $0x108] sm:$0xff]
        %v215 = vld [vmem:[%s1 + $0x110] sm:$0xff]
        %v216 = vld [vmem:[%s1 + $0x118] sm:$0xff]
        %v217 = vld [vmem:[%s1 + $0x120] sm:$0xff]
        %v218 = vld [vmem:[%s1 + $0x128] sm:$0xff]
        %v219 = vld [vmem:[%s1 + $0x130] sm:$0xff]
        %v220 = vld [vmem:[%s1 + $0x138] sm:$0xff]
        %v221 = vld [vmem:[%s1 + $0x140] sm:$0xff]
        %v222 = vld [vmem:[%s1 + $0x148] sm:$0xff]
        %v223 = vld [vmem:[%s1 + $0x150] sm:$0xff]
        %v224 = vld [vmem:[%s1 + $0x158] sm:$0xff]
        %v225 = vld [vmem:[%s1 + $0x160] sm:$0xff]
        %v226 = vld [vmem:[%s1 + $0x168] sm:$0xff]
        %v227 = vld [vmem:[%s1 + $0x170] sm:$0xff]
        %v228 = vld [vmem:[%s1 + $0x178] sm:$0xff]
        %v229 = vld [vmem:[%s1 + $0x180] sm:$0xff]
        %v230 = vld [vmem:[%s1 + $0x188] sm:$0xff]
        %v231 = vld [vmem:[%s1 + $0x190] sm:$0xff]
        %v232 = vld [vmem:[%s1 + $0x198] sm:$0xff]
        %v233 = vld [vmem:[%s1 + $0x1a0] sm:$0xff]
        %v234 = vld [vmem:[%s1 + $0x1a8] sm:$0xff]
        %v235 = vld [vmem:[%s1 + $0x1b0] sm:$0xff]
        %v236 = vld [vmem:[%s1 + $0x1b8] sm:$0xff]
        %v237 = vld [vmem:[%s1 + $0x1c0] sm:$0xff]
        %v238 = vld [vmem:[%s1 + $0x1c8] sm:$0xff]
        %v239 = vld [vmem:[%s1 + $0x1d0] sm:$0xff]
        %v240 = vld [vmem:[%s1 + $0x1d8] sm:$0xff]
        %v241 = vld [vmem:[%s1 + $0x1e0] sm:$0xff]
        %v242 = vld [vmem:[%s1 + $0x1e8] sm:$0xff]
        %v243 = vld [vmem:[%s1 + $0x1f0] sm:$0xff]
        %v244 = vld [vmem:[%s1 + $0x1f8] sm:$0xff]
        %v245 = vld [vmem:[%s1 + $0x200] sm:$0xff]
        %v246 = vld [vmem:[%s1 + $0x208] sm:$0xff]
        %v247 = vld [vmem:[%s1 + $0x210] sm:$0xff]
        %v248 = vld [vmem:[%s1 + $0x218] sm:$0xff]
        %v249 = vld [vmem:[%s1 + $0x220] sm:$0xff]
        %v250 = vld [vmem:[%s1 + $0x228] sm:$0xff]
        %v251 = vld [vmem:[%s1 + $0x230] sm:$0xff]
        %v252 = vld [vmem:[%s1 + $0x238] sm:$0xff]
        %v253 = vld [vmem:[%s1 + $0x240] sm:$0xff]
        %v254 = vld [vmem:[%s1 + $0x248] sm:$0xff]
        %v255 = vld [vmem:[%s1 + $0x250] sm:$0xff]
        %v256 = vld [vmem:[%s1 + $0x258] sm:$0xff]
        %v257 = vld [vmem:[%s1 + $0x260] sm:$0xff]
        %v258 = vld [vmem:[%s1 + $0x268] sm:$0xff]
        %v259 = vld [vmem:[%s1 + $0x270] sm:$0xff]
        %v260 = vld [vmem:[%s1 + $0x278] sm:$0xff]
        %v261 = vld [vmem:[%s1 + $0x280] sm:$0xff]
        %v262 = vld [vmem:[%s1 + $0x288] sm:$0xff]
        %v263 = vld [vmem:[%s1 + $0x290] sm:$0xff]
        %v264 = vld [vmem:[%s1 + $0x298] sm:$0xff]
        %v265 = vld [vmem:[%s1 + $0x2a0] sm:$0xff]
        %v266 = vld [vmem:[%s1 + $0x2a8] sm:$0xff]
        %v267 = vld [vmem:[%s1 + $0x2b0] sm:$0xff]
        %v268 = vld [vmem:[%s1 + $0x2b8] sm:$0xff]
        %v269 = vld [vmem:[%s1 + $0x2c0] sm:$0xff]
        %v270 = vld [vmem:[%s1 + $0x2c8] sm:$0xff]
        %v271 = vld [vmem:[%s1 + $0x2d0] sm:$0xff]
        %v272 = vld [vmem:[%s1 + $0x2d8] sm:$0xff]
        %v273 = vld [vmem:[%s1 + $0x2e0] sm:$0xff]
        %v274 = vld [vmem:[%s1 + $0x2e8] sm:$0xff]
        %v275 = vld [vmem:[%s1 + $0x2f0] sm:$0xff]
        %v276 = vld [vmem:[%s1 + $0x2f8] sm:$0xff]
        %v277 = vld [vmem:[%s1 + $0x300] sm:$0xff]
        %v278 = vld [vmem:[%s1 + $0x308] sm:$0xff]
        %v279 = vld [vmem:[%s1 + $0x310] sm:$0xff]
        %v280 = vld [vmem:[%s1 + $0x318] sm:$0xff]
        %v281 = vld [vmem:[%s1 + $0x320] sm:$0xff]
        %v282 = vld [vmem:[%s1 + $0x328] sm:$0xff]
        %v283 = vld [vmem:[%s1 + $0x330] sm:$0xff]
        %v284 = vld [vmem:[%s1 + $0x338] sm:$0xff]
        %v285 = vld [vmem:[%s1 + $0x340] sm:$0xff]
        %v286 = vld [vmem:[%s1 + $0x348] sm:$0xff]
        %v287 = vld [vmem:[%s1 + $0x350] sm:$0xff]
        %v288 = vld [vmem:[%s1 + $0x358] sm:$0xff]
        %v289 = vld [vmem:[%s1 + $0x360] sm:$0xff]
        %v290 = vld [vmem:[%s1 + $0x368] sm:$0xff]
        %v291 = vld [vmem:[%s1 + $0x370] sm:$0xff]
        %v292 = vld [vmem:[%s1 + $0x378] sm:$0xff]
        %v293 = vld [vmem:[%s1 + $0x380] sm:$0xff]
        %v294 = vld [vmem:[%s1 + $0x388] sm:$0xff]
        %v295 = vld [vmem:[%s1 + $0x390] sm:$0xff]
        %v296 = vld [vmem:[%s1 + $0x398] sm:$0xff]
        %v297 = vld [vmem:[%s1 + $0x3a0] sm:$0xff]
        %v298 = vld [vmem:[%s1 + $0x3a8] sm:$0xff]
        %v299 = vld [vmem:[%s1 + $0x3b0] sm:$0xff]
        %v300 = vld [vmem:[%s1 + $0x3b8] sm:$0xff]
        %v301 = vld [vmem:[%s1 + $0x3c0] sm:$0xff]
        %v302 = vld [vmem:[%s1 + $0x3c8] sm:$0xff]
        %v303 = vld [vmem:[%s1 + $0x3d0] sm:$0xff]
        %v304 = vld [vmem:[%s1 + $0x3d8] sm:$0xff]
        %v305 = vld [vmem:[%s1 + $0x3e0] sm:$0xff]
        %v306 = vld [vmem:[%s1 + $0x3e8] sm:$0xff]
        %v307 = vld [vmem:[%s1 + $0x3f0] sm:$0x1f]
        %v308 = vld [vmem:[%s1 + $0x3f8] sm:$0x1f]
        %v309 = vld [vmem:[%s1 + $0x400] sm:$0x1f]
        %v310 = vld [vmem:[%s2] sm:$0x7]
        %v312 = vlaneseq
        %v313 = vshrl.u32 %v312, 7
        %v314 = vsub.s32 0, %v313
        %v315 = vrot.slane %v310, %v314
        %v316 = vlaneseq
        %v317 = vshrl.u32 %v316, 7
        %v318 = vsub.s32 1, %v317
        %v319 = vrot.slane %v310, %v318
        %v320 = vlaneseq
        %v321 = vshrl.u32 %v320, 7
        %v322 = vsub.s32 2, %v321
        %v323 = vrot.slane %v310, %v322
        %vm327 = vcmask 695296
        %v329 = vsel %vm327, %v177, 0
        %v332 = vsel %vm327, %v180, 0
        %vm334 = vcmask 1044480
        %v336 = vsel %vm334, %v307, 0
        %v339 = vsel %vm334, %v308, 0
        %v342 = vsel %vm334, %v309, 0
        %344 = vmatprep.subr.mxu0 %v227
        %345 = vmatpush1.msra.mxu0 %v226
        %346 = vmatprep.subr.mxu0 %v224
        %347 = vmatpush1.msra.mxu0 %v223
        %348 = vmatprep.subr.mxu0 %v221
        %349 = vmatpush1.msra.mxu0 %v220
        %350 = vmatprep.subr.mxu0 %v218
        %351 = vmatpush1.msra.mxu0 %v217
        %352 = vmatprep.subr.mxu0 %v215
        %353 = vmatpush1.msra.mxu0 %v214
        %354 = vmatprep.subr.mxu0 %v212
        %355 = vmatpush1.msra.mxu0 %v211
        %356 = vmatprep.subr.mxu0 %v209
        %357 = vmatpush1.msra.mxu0 %v208
        %358 = vmatprep.subr.mxu0 %v206
        %359 = vmatpush1.msra.mxu0 %v205
        %360 = vmatprep.subr.mxu0 %v203
        %361 = vmatpush1.msra.mxu0 %v202
        %362 = vmatprep.subr.mxu0 %v200
        %363 = vmatpush1.msra.mxu0 %v199
        %364 = vmatprep.subr.mxu0 %v197
        %365 = vmatpush1.msra.mxu0 %v196
        %366 = vmatprep.subr.mxu0 %v194
        %367 = vmatpush1.msra.mxu0 %v193
        %368 = vmatprep.subr.mxu0 %v191
        %369 = vmatpush1.msra.mxu0 %v190
        %370 = vmatprep.subr.mxu0 %v188
        %371 = vmatpush1.msra.mxu0 %v187
        %372 = vmatprep.subr.mxu0 %v185
        %373 = vmatpush1.msra.mxu0 %v184
        %374 = vmatprep.subr.mxu0 %v182
        %375 = vmatpush1.msra.mxu0 %v181
        %376 = vmatprep.subr.mxu0 %v275
        %377 = vmatpush2.msra.mxu0 %v274
        %378 = vmatprep.subr.mxu0 %v272
        %379 = vmatpush2.msra.mxu0 %v271
        %380 = vmatprep.subr.mxu0 %v269
        %381 = vmatpush2.msra.mxu0 %v268
        %382 = vmatprep.subr.mxu0 %v266
        %383 = vmatpush2.msra.mxu0 %v265
        %384 = vmatprep.subr.mxu0 %v263
        %385 = vmatpush2.msra.mxu0 %v262
        %386 = vmatprep.subr.mxu0 %v260
        %387 = vmatpush2.msra.mxu0 %v259
        %388 = vmatprep.subr.mxu0 %v257
        %389 = vmatpush2.msra.mxu0 %v256
        %390 = vmatprep.subr.mxu0 %v254
        %391 = vmatpush2.msra.mxu0 %v253
        %392 = vmatprep.subr.mxu0 %v251
        %393 = vmatpush2.msra.mxu0 %v250
        %394 = vmatprep.subr.mxu0 %v248
        %395 = vmatpush2.msra.mxu0 %v247
        %396 = vmatprep.subr.mxu0 %v245
        %397 = vmatpush2.msra.mxu0 %v244
        %398 = vmatprep.subr.mxu0 %v242
        %399 = vmatpush2.msra.mxu0 %v241
        %400 = vmatprep.subr.mxu0 %v239
        %401 = vmatpush2.msra.mxu0 %v238
        %402 = vmatprep.subr.mxu0 %v236
        %403 = vmatpush2.msra.mxu0 %v235
        %404 = vmatprep.subr.mxu0 %v233
        %405 = vmatpush2.msra.mxu0 %v232
        %406 = vmatprep.subr.mxu0 %v230
        %407 = vmatpush2.msra.mxu0 %v229
        %408 = vmatprep.mubr.f32.mxu0 %v176
        %409 = vmatmul.mubr.f32.gmra.mxu0 %v175
        %v410 = vpop.f32.mrf.mxu0
        %v411 = vadd.f32 %v315, %v410
        %v412 = vpop.f32.mrf.mxu0
        %v413 = vadd.f32 %v319, %v412
        %414 = vmatprep.mubr.f32.mxu0 %v179
        %415 = vmatmul.mubr.f32.gmra.mxu0 %v178
        %v416 = vpop.f32.mrf.mxu0
        %v417 = vadd.f32 %v315, %v416
        %v418 = vpop.f32.mrf.mxu0
        %v419 = vadd.f32 %v319, %v418
        %420 = vdwg.mxu0
        %421 = vmatprep.subr.mxu0 0.0
        %422 = vmatpush1.msra.mxu0 0.0
        %423 = vmatprep.subr.mxu0 0.0
        %424 = vmatpush1.msra.mxu0 0.0
        %425 = vmatprep.subr.mxu0 0.0
        %426 = vmatpush1.msra.mxu0 0.0
        %427 = vmatprep.subr.mxu0 0.0
        %428 = vmatpush1.msra.mxu0 0.0
        %429 = vmatprep.subr.mxu0 0.0
        %430 = vmatpush1.msra.mxu0 0.0
        %431 = vmatprep.subr.mxu0 %v339
        %432 = vmatpush1.msra.mxu0 %v336
        %433 = vmatprep.subr.mxu0 %v305
        %434 = vmatpush1.msra.mxu0 %v304
        %435 = vmatprep.subr.mxu0 %v302
        %436 = vmatpush1.msra.mxu0 %v301
        %437 = vmatprep.subr.mxu0 %v299
        %438 = vmatpush1.msra.mxu0 %v298
        %439 = vmatprep.subr.mxu0 %v296
        %440 = vmatpush1.msra.mxu0 %v295
        %441 = vmatprep.subr.mxu0 %v293
        %442 = vmatpush1.msra.mxu0 %v292
        %443 = vmatprep.subr.mxu0 %v290
        %444 = vmatpush1.msra.mxu0 %v289
        %445 = vmatprep.subr.mxu0 %v287
        %446 = vmatpush1.msra.mxu0 %v286
        %447 = vmatprep.subr.mxu0 %v284
        %448 = vmatpush1.msra.mxu0 %v283
        %449 = vmatprep.subr.mxu0 %v281
        %450 = vmatpush1.msra.mxu0 %v280
        %451 = vmatprep.subr.mxu0 %v278
        %452 = vmatpush1.msra.mxu0 %v277
        %453 = vmatprep.subr.mxu0 0.0
        %454 = vmatpush2.msra.mxu0 0.0
        %455 = vmatprep.subr.mxu0 0.0
        %456 = vmatpush2.msra.mxu0 0.0
        %457 = vmatprep.subr.mxu0 0.0
        %458 = vmatpush2.msra.mxu0 0.0
        %459 = vmatprep.subr.mxu0 0.0
        %460 = vmatpush2.msra.mxu0 0.0
        %461 = vmatprep.subr.mxu0 0.0
        %462 = vmatpush2.msra.mxu0 0.0
        %463 = vmatprep.subr.mxu0 0.0
        %464 = vmatpush2.msra.mxu0 0.0
        %465 = vmatprep.subr.mxu0 0.0
        %466 = vmatpush2.msra.mxu0 0.0
        %467 = vmatprep.subr.mxu0 0.0
        %468 = vmatpush2.msra.mxu0 0.0
        %469 = vmatprep.subr.mxu0 0.0
        %470 = vmatpush2.msra.mxu0 0.0
        %471 = vmatprep.subr.mxu0 0.0
        %472 = vmatpush2.msra.mxu0 0.0
        %473 = vmatprep.subr.mxu0 0.0
        %474 = vmatpush2.msra.mxu0 0.0
        %475 = vmatprep.subr.mxu0 0.0
        %476 = vmatpush2.msra.mxu0 0.0
        %477 = vmatprep.subr.mxu0 0.0
        %478 = vmatpush2.msra.mxu0 0.0
        %479 = vmatprep.subr.mxu0 0.0
        %480 = vmatpush2.msra.mxu0 0.0
        %481 = vmatprep.subr.mxu0 0.0
        %482 = vmatpush2.msra.mxu0 0.0
        %483 = vmatprep.subr.mxu0 0.0
        %484 = vmatpush2.msra.mxu0 0.0
        %485 = vmatprep.mubr.f32.mxu0 0.0
        %486 = vmatmul.mubr.f32.gmra.mxu0 %v329
        %v487 = vpop.f32.mrf.mxu0
        %v488 = vadd.f32 %v411, %v487
        %v489 = vpop.f32.mrf.mxu0
        %v490 = vadd.f32 %v413, %v489
        %491 = vmatprep.mubr.f32.mxu0 0.0
        %492 = vmatmul.mubr.f32.gmra.mxu0 %v332
        %v493 = vpop.f32.mrf.mxu0
        %v494 = vadd.f32 %v417, %v493
        %v495 = vpop.f32.mrf.mxu0
        %v496 = vadd.f32 %v419, %v495
        %497 = vdwg.mxu0
        %498 = vmatprep.subr.mxu0 0.0
        %499 = vmatpush1.msra.mxu0 %v228
        %500 = vmatprep.subr.mxu0 0.0
        %501 = vmatpush1.msra.mxu0 %v225
        %502 = vmatprep.subr.mxu0 0.0
        %503 = vmatpush1.msra.mxu0 %v222
        %504 = vmatprep.subr.mxu0 0.0
        %505 = vmatpush1.msra.mxu0 %v219
        %506 = vmatprep.subr.mxu0 0.0
        %507 = vmatpush1.msra.mxu0 %v216
        %508 = vmatprep.subr.mxu0 0.0
        %509 = vmatpush1.msra.mxu0 %v213
        %510 = vmatprep.subr.mxu0 0.0
        %511 = vmatpush1.msra.mxu0 %v210
        %512 = vmatprep.subr.mxu0 0.0
        %513 = vmatpush1.msra.mxu0 %v207
        %514 = vmatprep.subr.mxu0 0.0
        %515 = vmatpush1.msra.mxu0 %v204
        %516 = vmatprep.subr.mxu0 0.0
        %517 = vmatpush1.msra.mxu0 %v201
        %518 = vmatprep.subr.mxu0 0.0
        %519 = vmatpush1.msra.mxu0 %v198
        %520 = vmatprep.subr.mxu0 0.0
        %521 = vmatpush1.msra.mxu0 %v195
        %522 = vmatprep.subr.mxu0 0.0
        %523 = vmatpush1.msra.mxu0 %v192
        %524 = vmatprep.subr.mxu0 0.0
        %525 = vmatpush1.msra.mxu0 %v189
        %526 = vmatprep.subr.mxu0 0.0
        %527 = vmatpush1.msra.mxu0 %v186
        %528 = vmatprep.subr.mxu0 0.0
        %529 = vmatpush1.msra.mxu0 %v183
        %530 = vmatprep.subr.mxu0 0.0
        %531 = vmatpush2.msra.mxu0 %v276
        %532 = vmatprep.subr.mxu0 0.0
        %533 = vmatpush2.msra.mxu0 %v273
        %534 = vmatprep.subr.mxu0 0.0
        %535 = vmatpush2.msra.mxu0 %v270
        %536 = vmatprep.subr.mxu0 0.0
        %537 = vmatpush2.msra.mxu0 %v267
        %538 = vmatprep.subr.mxu0 0.0
        %539 = vmatpush2.msra.mxu0 %v264
        %540 = vmatprep.subr.mxu0 0.0
        %541 = vmatpush2.msra.mxu0 %v261
        %542 = vmatprep.subr.mxu0 0.0
        %543 = vmatpush2.msra.mxu0 %v258
        %544 = vmatprep.subr.mxu0 0.0
        %545 = vmatpush2.msra.mxu0 %v255
        %546 = vmatprep.subr.mxu0 0.0
        %547 = vmatpush2.msra.mxu0 %v252
        %548 = vmatprep.subr.mxu0 0.0
        %549 = vmatpush2.msra.mxu0 %v249
        %550 = vmatprep.subr.mxu0 0.0
        %551 = vmatpush2.msra.mxu0 %v246
        %552 = vmatprep.subr.mxu0 0.0
        %553 = vmatpush2.msra.mxu0 %v243
        %554 = vmatprep.subr.mxu0 0.0
        %555 = vmatpush2.msra.mxu0 %v240
        %556 = vmatprep.subr.mxu0 0.0
        %557 = vmatpush2.msra.mxu0 %v237
        %558 = vmatprep.subr.mxu0 0.0
        %559 = vmatpush2.msra.mxu0 %v234
        %560 = vmatprep.subr.mxu0 0.0
        %561 = vmatpush2.msra.mxu0 %v231
        %562 = vmatprep.mubr.f32.mxu0 %v176
        %563 = vmatmul.mubr.f32.gmra.mxu0 %v175
        %v564 = vpop.f32.mrf.mxu0
        %v565 = vadd.f32 %v323, %v564
        %v566 = vpop.f32.mrf.mxu0
        %567 = vmatprep.mubr.f32.mxu0 %v179
        %568 = vmatmul.mubr.f32.gmra.mxu0 %v178
        %v569 = vpop.f32.mrf.mxu0
        %v570 = vadd.f32 %v323, %v569
        %v571 = vpop.f32.mrf.mxu0
        %572 = vdwg.mxu0
        %573 = vmatprep.subr.mxu0 0.0
        %574 = vmatpush1.msra.mxu0 0.0
        %575 = vmatprep.subr.mxu0 0.0
        %576 = vmatpush1.msra.mxu0 0.0
        %577 = vmatprep.subr.mxu0 0.0
        %578 = vmatpush1.msra.mxu0 0.0
        %579 = vmatprep.subr.mxu0 0.0
        %580 = vmatpush1.msra.mxu0 0.0
        %581 = vmatprep.subr.mxu0 0.0
        %582 = vmatpush1.msra.mxu0 0.0
        %583 = vmatprep.subr.mxu0 0.0
        %584 = vmatpush1.msra.mxu0 %v342
        %585 = vmatprep.subr.mxu0 0.0
        %586 = vmatpush1.msra.mxu0 %v306
        %587 = vmatprep.subr.mxu0 0.0
        %588 = vmatpush1.msra.mxu0 %v303
        %589 = vmatprep.subr.mxu0 0.0
        %590 = vmatpush1.msra.mxu0 %v300
        %591 = vmatprep.subr.mxu0 0.0
        %592 = vmatpush1.msra.mxu0 %v297
        %593 = vmatprep.subr.mxu0 0.0
        %594 = vmatpush1.msra.mxu0 %v294
        %595 = vmatprep.subr.mxu0 0.0
        %596 = vmatpush1.msra.mxu0 %v291
        %597 = vmatprep.subr.mxu0 0.0
        %598 = vmatpush1.msra.mxu0 %v288
        %599 = vmatprep.subr.mxu0 0.0
        %600 = vmatpush1.msra.mxu0 %v285
        %601 = vmatprep.subr.mxu0 0.0
        %602 = vmatpush1.msra.mxu0 %v282
        %603 = vmatprep.subr.mxu0 0.0
        %604 = vmatpush1.msra.mxu0 %v279
        %605 = vmatprep.subr.mxu0 0.0
        %606 = vmatpush2.msra.mxu0 0.0
        %607 = vmatprep.subr.mxu0 0.0
        %608 = vmatpush2.msra.mxu0 0.0
        %609 = vmatprep.subr.mxu0 0.0
        %610 = vmatpush2.msra.mxu0 0.0
        %611 = vmatprep.subr.mxu0 0.0
        %612 = vmatpush2.msra.mxu0 0.0
        %613 = vmatprep.subr.mxu0 0.0
        %614 = vmatpush2.msra.mxu0 0.0
        %615 = vmatprep.subr.mxu0 0.0
        %616 = vmatpush2.msra.mxu0 0.0
        %617 = vmatprep.subr.mxu0 0.0
        %618 = vmatpush2.msra.mxu0 0.0
        %619 = vmatprep.subr.mxu0 0.0
        %620 = vmatpush2.msra.mxu0 0.0
        %621 = vmatprep.subr.mxu0 0.0
        %622 = vmatpush2.msra.mxu0 0.0
        %623 = vmatprep.subr.mxu0 0.0
        %624 = vmatpush2.msra.mxu0 0.0
        %625 = vmatprep.subr.mxu0 0.0
        %626 = vmatpush2.msra.mxu0 0.0
        %627 = vmatprep.subr.mxu0 0.0
        %628 = vmatpush2.msra.mxu0 0.0
        %629 = vmatprep.subr.mxu0 0.0
        %630 = vmatpush2.msra.mxu0 0.0
        %631 = vmatprep.subr.mxu0 0.0
        %632 = vmatpush2.msra.mxu0 0.0
        %633 = vmatprep.subr.mxu0 0.0
        %634 = vmatpush2.msra.mxu0 0.0
        %635 = vmatprep.subr.mxu0 0.0
        %636 = vmatpush2.msra.mxu0 0.0
        %637 = vmatprep.mubr.f32.mxu0 0.0
        %638 = vmatmul.mubr.f32.gmra.mxu0 %v329
        %v639 = vpop.f32.mrf.mxu0
        %v640 = vadd.f32 %v565, %v639
        %v641 = vpop.f32.mrf.mxu0
        %642 = vmatprep.mubr.f32.mxu0 0.0
        %643 = vmatmul.mubr.f32.gmra.mxu0 %v332
        %v644 = vpop.f32.mrf.mxu0
        %v645 = vadd.f32 %v570, %v644
        %v646 = vpop.f32.mrf.mxu0
        %647 = vdwg.mxu0
        %648 = vst [vmem:[%s166] sm:$0xff] %v488
        %649 = vst [vmem:[%s166 + $0x8] sm:$0xff] %v490
        %650 = vst [vmem:[%s166 + $0x10] sm:$0xff] %v640
        %651 = vst [vmem:[%s166 + $0x18] sm:$0xff] %v494
        %652 = vst [vmem:[%s166 + $0x20] sm:$0xff] %v496
        %653 = vst [vmem:[%s166 + $0x28] sm:$0xff] %v645
        %s654 = sand.u32 %s93, 1
        %s655 = scalar_lea.sflag [#allocation3], %s654
        %s656 = sand.u32 %s93, 1
        %s657 = smul.addr %s656, 48
        %s658 = scalar_lea.vmem [#allocation2], %s657
        // Predicated region
        $region33: #{_bdae_padded_out.1} parent=31 // pred_check
          %p659 = pneg %p103
        $region34: #{_bdae_padded_out.1} parent=31 // pred_check_branch
          %661 = sbr.rel (%p659) target = $region36
        $region35: #{_bdae_padded_out.1} parent=31 // pred_region
          %s662 = smul.u32 2, %s17
          %s664 = ssub.s32 768, 768
          %665 = vsyncadd %s655, %s664
          %s666 = smul.addr %s662, 3
          %s667 = smul.addr %s666, 128
          %s668 = scalar_lea.hbm %s3, %s667
          %s669 = sshll.u32 %s658, 4
          %s670 = int_to_ptr.vmem [resolvable:$true] %s669
          %675 = dma.vmem_to_hbm [thread:$0]  %s670, 768, %s668, %s655, 384, 384, 24
        $region36: #{_bdae_padded_out.1} parent=31 // pred_fallthru
          _
      $region32: #{_bdae_padded_out.1} parent=5 // pred_fallthru
        _
      %p676 = scmp.le.s32.totalorder 2, %s12
      // Predicated region
      $region37: #{_bdae_padded_out.1} parent=5 // pred_check
        %p677 = pneg %p676
      $region38: #{_bdae_padded_out.1} parent=5 // pred_check_branch
        %679 = sbr.rel (%p677) target = $region40
      $region39: #{_bdae_padded_out.1} parent=5 // pred_region
        %s680 = ssub.s32 %s12, 2
        // Predicated region
        $region41: #{_bdae_padded_out.1} parent=39 // pred_check
          %p681 = pneg %p109
        $region42: #{_bdae_padded_out.1} parent=39 // pred_check_branch
          %683 = sbr.rel (%p681) target = $region44
        $region43: #{_bdae_padded_out.1} parent=39 // pred_region
          %s684 = sand.u32 %s94, 1
          %s685 = scalar_lea.sflag [#allocation3], %s684
          %s686 = sand.u32 %s94, 1
          %s687 = smul.addr %s686, 48
          %s688 = scalar_lea.vmem [#allocation2], %s687
          %689 = dma.done %s685, 768
        $region44: #{_bdae_padded_out.1} parent=39 // pred_fallthru
          _
      $region40: #{_bdae_padded_out.1} parent=5 // pred_fallthru
        _
    $region6: #{_bdae_padded_out.1} parent=1 // loop_footer
      %s16 = sadd.s32 1, %s12
    $region7: #{_bdae_padded_out.1} parent=1 // loop_footer_branch
      %11 = sbr.rel target = $region3
    $region8: #{_bdae_padded_out.1} parent=1 // loop_exit
      _
    %690 = vsyncpa [#allocation3], 1
    %s691 = scalar_lea.sflag [#allocation3], 1
    %692 = vsyncpa %s691, 1

</llo_original>
